<compile_context>
chip_gen: v7x
topology: tpu7x:2x2x1
jax: 0.10.0
libtpu: 0.0.40
codegen_flags: <defaults>
</compile_context>

<pallas_src>
import functools
import math

import jax
import jax.numpy as jnp
from jax import lax
from jax.experimental import pallas as pl
from jax.experimental.pallas import tpu as pltpu


def _mha_kernel(xq_ref, kT_ref, v_ref, wq_ref, bq_ref, wo_ref, bo_ref,
                o_ref, ctx_scratch, *, h, d_k, eps):
    # ---- Q projection for this (batch, Sq) tile: bf16 MXU in, f32 acc ----
    qp = jnp.dot(xq_ref[...], wq_ref[...],
                 preferred_element_type=jnp.float32) + bq_ref[...]   # (Sq, D)

    # ---- InstanceNorm1d over d_model (per row, biased variance, no affine),
    #      with the attention scale 1/sqrt(d_k) folded into the rsqrt factor ----
    mu = jnp.mean(qp, axis=-1, keepdims=True)
    var = jnp.mean(jnp.square(qp - mu), axis=-1, keepdims=True)
    inv = lax.rsqrt(var + eps) * (1.0 / math.sqrt(d_k))              # (Sq, 1)
    qn = ((qp - mu) * inv).astype(jnp.bfloat16)                      # (Sq, D)

    # ---- per-head attention: static loop over lane slices; K pre-transposed
    #      in the wrapper so QK^T and PV are plain NN dots ----
    for i in range(h):
        q_i = qn[:, i * d_k:(i + 1) * d_k]                           # (Sq, d_k)
        s = jnp.dot(q_i, kT_ref[i],
                    preferred_element_type=jnp.float32)              # (Sq, S)
        m = jnp.max(s, axis=-1, keepdims=True)
        e = jnp.exp(s - m)
        denom = jnp.sum(e, axis=-1, keepdims=True)
        # dropout(p) is identity in eval mode.
        ctx_un = jnp.dot(e.astype(jnp.bfloat16), v_ref[i],
                         preferred_element_type=jnp.float32)         # (Sq, d_k)
        ctx = ctx_un * pl.reciprocal(denom, approx=True)
        ctx_scratch[:, i * d_k:(i + 1) * d_k] = ctx.astype(jnp.bfloat16)

    # ---- single K=D output projection from the assembled (Sq, D) context ----
    out = jnp.dot(ctx_scratch[...], wo_ref[...],
                  preferred_element_type=jnp.float32) + bo_ref[...]
    o_ref[...] = out.astype(o_ref.dtype)


def _vmem_budget_bytes():
    """3/4 of physical per-core VMEM (v5e/v6e: 128 MiB, v7x: 64 MiB)."""
    try:
        cap = pltpu.get_tpu_info().vmem_capacity_bytes
    except Exception:
        cap = 64 * 1024 * 1024
    return int(cap) * 3 // 4


def _pick_block_sq(S, D, budget_bytes):
    """Largest divisor of S (multiple of 8 when possible) whose per-tile VMEM
    footprint fits the budget."""
    fixed = (2 * (2 * S * D * 2)       # K^T and V blocks, double-buffered bf16
             + 2 * D * D * 2           # Wq, Wo (bf16, single pipeline buffer)
             + 2 * 2 * D * 4)          # biases
    cands = sorted({c for c in range(8, S + 1, 8) if S % c == 0} | {S},
                   reverse=True)
    for c in cands:
        per_tile = (2 * c * S * 4      # scores + exp (f32), one head live
                    + 2 * c * D * 2    # Q input block, double-buffered bf16
                    + 2 * c * D * 4    # output block, double-buffered f32
                    + c * D * 2        # ctx scratch (bf16)
                    + 3 * c * D * 4)   # f32 projection temporaries (headroom)
        if fixed + per_tile <= budget_bytes:
            return c
    return cands[-1]


def multi_headed_attention(query, key, value, params, *, h, block_sq=None):
    B, S, D = query.shape
    assert D % h == 0
    d_k = D // h

    budget = _vmem_budget_bytes()
    if block_sq is None:
        block_sq = _pick_block_sq(S, D, budget)
    # TODO(synk): remainder masking for ragged S (S % block_sq != 0) not implemented.
    assert S % block_sq == 0
    n_sq = S // block_sq

    wq, bq, wk, bk, wv, bv, wo, bo = params

    # ---- hoisted K/V projections (plain XLA, f32 math), bf16 + head split,
    #      K pre-transposed so the in-kernel QK^T needs no XLU transpose ----
    kp = (key @ wk + bk).astype(jnp.bfloat16)                        # (B, S, D)
    vp = (value @ wv + bv).astype(jnp.bfloat16)
    kT = kp.reshape(B, S, h, d_k).transpose(0, 2, 3, 1)              # (B, h, d_k, S)
    vh = vp.reshape(B, S, h, d_k).transpose(0, 2, 1, 3)              # (B, h, S, d_k)

    xq = query.astype(jnp.bfloat16)          # bf16 activations at the boundary
    wq_b = wq.astype(jnp.bfloat16)
    wo_b = wo.astype(jnp.bfloat16)
    bq2 = bq.reshape(1, D).astype(jnp.float32)
    bo2 = bo.reshape(1, D).astype(jnp.float32)

    kernel = functools.partial(_mha_kernel, h=h, d_k=d_k, eps=1e-5)

    # Leading batch dim squeezed out of the kernel refs (None -> squeezed).
    q_spec = pl.BlockSpec((None, block_sq, D), lambda b, s: (b, s, 0))
    kT_spec = pl.BlockSpec((None, h, d_k, S), lambda b, s: (b, 0, 0, 0))
    v_spec = pl.BlockSpec((None, h, S, d_k), lambda b, s: (b, 0, 0, 0))
    # Constant-index weight/bias blocks: single pipeline buffer (no dead 2nd buf).
    w_spec = pl.BlockSpec((D, D), lambda b, s: (0, 0),
                          pipeline_mode=pl.Buffered(1))
    b_spec = pl.BlockSpec((1, D), lambda b, s: (0, 0),
                          pipeline_mode=pl.Buffered(1))
    out_spec = pl.BlockSpec((None, block_sq, D), lambda b, s: (b, s, 0))

    return pl.pallas_call(
        kernel,
        out_shape=jax.ShapeDtypeStruct((B, S, D), query.dtype),
        grid=(B, n_sq),
        in_specs=[q_spec, kT_spec, v_spec,
                  w_spec, b_spec, w_spec, b_spec],
        out_specs=out_spec,
        scratch_shapes=[pltpu.VMEM((block_sq, D), jnp.bfloat16)],   # ctx tile
        compiler_params=pltpu.CompilerParams(
            dimension_semantics=("parallel", "parallel"),
            vmem_limit_bytes=budget),
    )(xq, kT, vh, wq_b, bq2, wo_b, bo2)


def _reference(query, key, value, params, h):
    """Pure-JAX f32 reference (mirrors the torch forward in eval mode)."""
    wq, bq, wk, bk, wv, bv, wo, bo = params
    B, S, D = query.shape
    d_k = D // h
    qp = query @ wq + bq
    mu = qp.mean(-1, keepdims=True)
    var = ((qp - mu) ** 2).mean(-1, keepdims=True)
    qn = (qp - mu) / jnp.sqrt(var + 1e-5)
    kp = key @ wk + bk
    vp = value @ wv + bv
    qh = qn.reshape(B, S, h, d_k).transpose(0, 2, 1, 3)
    kh = kp.reshape(B, S, h, d_k).transpose(0, 2, 1, 3)
    vh = vp.reshape(B, S, h, d_k).transpose(0, 2, 1, 3)
    scores = jnp.einsum('bhqd,bhkd->bhqk', qh, kh) / math.sqrt(d_k)
    p = jax.nn.softmax(scores, axis=-1)
    x = jnp.einsum('bhqk,bhkd->bhqd', p, vh).transpose(0, 2, 1, 3).reshape(B, S, D)
    return x @ wo + bo


if __name__ == "__main__":
    B, S, D, H = 2, 8, 32, 4

    key_root = jax.random.PRNGKey(0)
    keys = jax.random.split(key_root, 12)

    query = jax.random.normal(keys[0], (B, S, D), dtype=jnp.float32)
    key_in = jax.random.normal(keys[1], (B, S, D), dtype=jnp.float32)
    value = jax.random.normal(keys[2], (B, S, D), dtype=jnp.float32)

    def init_w(k):
        bound = 1.0 / math.sqrt(D)
        return jax.random.uniform(k, (D, D), jnp.float32, -bound, bound)

    def init_b(k):
        bound = 1.0 / math.sqrt(D)
        return jax.random.uniform(k, (D,), jnp.float32, -bound, bound)

    params = (init_w(keys[3]), init_b(keys[4]),   # Wq, bq
              init_w(keys[5]), init_b(keys[6]),   # Wk, bk
              init_w(keys[7]), init_b(keys[8]),   # Wv, bv
              init_w(keys[9]), init_b(keys[10]))  # Wo, bo

    out = multi_headed_attention(query, key_in, value, params, h=H)
    out = jax.block_until_ready(out)

    ref = _reference(query, key_in, value, params, H)
    assert out.shape == (B, S, D)
    # Tolerance reflects bf16 MXU inputs (and approx reciprocal) vs f32 reference.
    assert jnp.allclose(out, ref, atol=5e-2, rtol=5e-2), "mismatch vs reference"

    print("KERNEL_OK")
</pallas_src>

<mosaic_0001>
module attributes {stable_mosaic.version = 11 : i64} {
  func.func @_mha_kernel(%arg0: i32, %arg1: i32, %arg2: memref<1x8x32xbf16, #tpu.memory_space<vmem>>, %arg3: memref<1x4x8x8xbf16, #tpu.memory_space<vmem>>, %arg4: memref<1x4x8x8xbf16, #tpu.memory_space<vmem>>, %arg5: memref<32x32xbf16, #tpu.memory_space<vmem>>, %arg6: memref<1x32xf32, #tpu.memory_space<vmem>>, %arg7: memref<32x32xbf16, #tpu.memory_space<vmem>>, %arg8: memref<1x32xf32, #tpu.memory_space<vmem>>, %arg9: memref<1x8x32xf32, #tpu.memory_space<vmem>>, %arg10: memref<8x32xbf16, #tpu.memory_space<vmem>>) attributes {dimension_semantics = [#tpu.dimension_semantics<parallel>, #tpu.dimension_semantics<parallel>], iteration_bounds = array<i64: 2, 1>, scalar_prefetch = 0 : i64, scratch_operands = 1 : i64, tpu.core_type = #tpu.core_type<tc>, window_params = [{transform_indices = @transform_0, window_bounds = array<i64: 1, 8, 32>}, {transform_indices = @transform_1, window_bounds = array<i64: 1, 4, 8, 8>}, {transform_indices = @transform_2, window_bounds = array<i64: 1, 4, 8, 8>}, {pipeline_mode = #tpu.pipeline_mode<synchronous>, transform_indices = @transform_3, window_bounds = array<i64: 32, 32>}, {pipeline_mode = #tpu.pipeline_mode<synchronous>, transform_indices = @transform_4, window_bounds = array<i64: 1, 32>}, {pipeline_mode = #tpu.pipeline_mode<synchronous>, transform_indices = @transform_5, window_bounds = array<i64: 32, 32>}, {pipeline_mode = #tpu.pipeline_mode<synchronous>, transform_indices = @transform_6, window_bounds = array<i64: 1, 32>}, {transform_indices = @transform_7, window_bounds = array<i64: 1, 8, 32>}]} {
    %c0 = arith.constant 0 : index
    %c0_0 = arith.constant 0 : index
    %c0_1 = arith.constant 0 : index
    %0 = vector.load %arg2[%c0, %c0_0, %c0_1] : memref<1x8x32xbf16, #tpu.memory_space<vmem>>, vector<1x8x32xbf16>
    %1 = vector.shape_cast %0 : vector<1x8x32xbf16> to vector<8x32xbf16>
    %c0_2 = arith.constant 0 : index
    %c0_3 = arith.constant 0 : index
    %2 = vector.load %arg5[%c0_2, %c0_3] : memref<32x32xbf16, #tpu.memory_space<vmem>>, vector<32x32xbf16>
    %cst = arith.constant dense<0.000000e+00> : vector<8x32xf32>
    %3 = tpu.matmul %1, %2, %cst {dimension_numbers = #tpu.dot_dimension_numbers<[1], [0], [0], [1], [0, 0, 1, 1], [], []>} : vector<8x32xbf16>, vector<32x32xbf16>, vector<8x32xf32> -> vector<8x32xf32>
    %c0_4 = arith.constant 0 : index
    %c0_5 = arith.constant 0 : index
    %4 = vector.load %arg6[%c0_4, %c0_5] : memref<1x32xf32, #tpu.memory_space<vmem>>, vector<1x32xf32>
    %5 = vector.broadcast %4 : vector<1x32xf32> to vector<8x32xf32>
    %6 = arith.addf %3, %5 : vector<8x32xf32>
    %cst_6 = arith.constant dense<0.000000e+00> : vector<8xf32>
    %7 = vector.multi_reduction <add>, %6, %cst_6 [1] : vector<8x32xf32> to vector<8xf32>
    %8 = vector.shape_cast %7 : vector<8xf32> to vector<8x1xf32>
    %cst_7 = arith.constant 3.200000e+01 : f32
    %9 = vector.broadcast %cst_7 : f32 to vector<8x1xf32>
    %10 = arith.divf %8, %9 : vector<8x1xf32>
    %11 = vector.broadcast %10 : vector<8x1xf32> to vector<8x32xf32>
    %12 = arith.subf %6, %11 : vector<8x32xf32>
    %13 = arith.mulf %12, %12 : vector<8x32xf32>
    %cst_8 = arith.constant dense<0.000000e+00> : vector<8xf32>
    %14 = vector.multi_reduction <add>, %13, %cst_8 [1] : vector<8x32xf32> to vector<8xf32>
    %15 = vector.shape_cast %14 : vector<8xf32> to vector<8x1xf32>
    %cst_9 = arith.constant 3.200000e+01 : f32
    %16 = vector.broadcast %cst_9 : f32 to vector<8x1xf32>
    %17 = arith.divf %15, %16 : vector<8x1xf32>
    %cst_10 = arith.constant 9.99999974E-6 : f32
    %18 = vector.broadcast %cst_10 : f32 to vector<8x1xf32>
    %19 = arith.addf %17, %18 : vector<8x1xf32>
    %20 = math.rsqrt %19 : vector<8x1xf32>
    %cst_11 = arith.constant 0.353553385 : f32
    %21 = vector.broadcast %cst_11 : f32 to vector<8x1xf32>
    %22 = arith.mulf %20, %21 : vector<8x1xf32>
    %23 = vector.broadcast %10 : vector<8x1xf32> to vector<8x32xf32>
    %24 = arith.subf %6, %23 : vector<8x32xf32>
    %25 = vector.broadcast %22 : vector<8x1xf32> to vector<8x32xf32>
    %26 = arith.mulf %24, %25 : vector<8x32xf32>
    %27 = arith.truncf %26 : vector<8x32xf32> to vector<8x32xbf16>
    %28 = vector.extract_strided_slice %27 {offsets = [0, 0], sizes = [8, 8], strides = [1, 1]} : vector<8x32xbf16> to vector<8x8xbf16>
    %c0_12 = arith.constant 0 : index
    %c0_13 = arith.constant 0 : index
    %c0_14 = arith.constant 0 : index
    %c0_15 = arith.constant 0 : index
    %29 = vector.load %arg3[%c0_12, %c0_13, %c0_14, %c0_15] : memref<1x4x8x8xbf16, #tpu.memory_space<vmem>>, vector<1x1x8x8xbf16>
    %30 = vector.shape_cast %29 : vector<1x1x8x8xbf16> to vector<8x8xbf16>
    %cst_16 = arith.constant dense<0.000000e+00> : vector<8x8xf32>
    %31 = tpu.matmul %28, %30, %cst_16 {dimension_numbers = #tpu.dot_dimension_numbers<[1], [0], [0], [1], [0, 0, 1, 1], [], []>} : vector<8x8xbf16>, vector<8x8xbf16>, vector<8x8xf32> -> vector<8x8xf32>
    %cst_17 = arith.constant dense<0xFF800000> : vector<8xf32>
    %32 = vector.multi_reduction <maximumf>, %31, %cst_17 [1] : vector<8x8xf32> to vector<8xf32>
    %33 = vector.shape_cast %32 : vector<8xf32> to vector<8x1xf32>
    %34 = vector.broadcast %33 : vector<8x1xf32> to vector<8x8xf32>
    %35 = arith.subf %31, %34 : vector<8x8xf32>
    %36 = math.exp %35 : vector<8x8xf32>
    %cst_18 = arith.constant dense<0.000000e+00> : vector<8xf32>
    %37 = vector.multi_reduction <add>, %36, %cst_18 [1] : vector<8x8xf32> to vector<8xf32>
    %38 = vector.shape_cast %37 : vector<8xf32> to vector<8x1xf32>
    %39 = arith.truncf %36 : vector<8x8xf32> to vector<8x8xbf16>
    %c0_19 = arith.constant 0 : index
    %c0_20 = arith.constant 0 : index
    %c0_21 = arith.constant 0 : index
    %c0_22 = arith.constant 0 : index
    %40 = vector.load %arg4[%c0_19, %c0_20, %c0_21, %c0_22] : memref<1x4x8x8xbf16, #tpu.memory_space<vmem>>, vector<1x1x8x8xbf16>
    %41 = vector.shape_cast %40 : vector<1x1x8x8xbf16> to vector<8x8xbf16>
    %cst_23 = arith.constant dense<0.000000e+00> : vector<8x8xf32>
    %42 = tpu.matmul %39, %41, %cst_23 {dimension_numbers = #tpu.dot_dimension_numbers<[1], [0], [0], [1], [0, 0, 1, 1], [], []>} : vector<8x8xbf16>, vector<8x8xbf16>, vector<8x8xf32> -> vector<8x8xf32>
    %43 = tpu.reciprocal %38 {approx = true} : vector<8x1xf32> -> vector<8x1xf32>
    %44 = vector.broadcast %43 : vector<8x1xf32> to vector<8x8xf32>
    %45 = arith.mulf %42, %44 : vector<8x8xf32>
    %46 = arith.truncf %45 : vector<8x8xf32> to vector<8x8xbf16>
    %c0_24 = arith.constant 0 : index
    %c0_25 = arith.constant 0 : index
    %47 = vector.load %arg10[%c0_24, %c0_25] : memref<8x32xbf16, #tpu.memory_space<vmem>>, vector<8x8xbf16>
    tpu.vector_store %arg10[%c0_24, %c0_25], %46 {strides = array<i32>} : memref<8x32xbf16, #tpu.memory_space<vmem>>, vector<8x8xbf16>,
    %48 = vector.extract_strided_slice %27 {offsets = [0, 8], sizes = [8, 8], strides = [1, 1]} : vector<8x32xbf16> to vector<8x8xbf16>
    %c0_26 = arith.constant 0 : index
    %c1 = arith.constant 1 : index
    %c0_27 = arith.constant 0 : index
    %c0_28 = arith.constant 0 : index
    %49 = vector.load %arg3[%c0_26, %c1, %c0_27, %c0_28] : memref<1x4x8x8xbf16, #tpu.memory_space<vmem>>, vector<1x1x8x8xbf16>
    %50 = vector.shape_cast %49 : vector<1x1x8x8xbf16> to vector<8x8xbf16>
    %cst_29 = arith.constant dense<0.000000e+00> : vector<8x8xf32>
    %51 = tpu.matmul %48, %50, %cst_29 {dimension_numbers = #tpu.dot_dimension_numbers<[1], [0], [0], [1], [0, 0, 1, 1], [], []>} : vector<8x8xbf16>, vector<8x8xbf16>, vector<8x8xf32> -> vector<8x8xf32>
    %cst_30 = arith.constant dense<0xFF800000> : vector<8xf32>
    %52 = vector.multi_reduction <maximumf>, %51, %cst_30 [1] : vector<8x8xf32> to vector<8xf32>
    %53 = vector.shape_cast %52 : vector<8xf32> to vector<8x1xf32>
    %54 = vector.broadcast %53 : vector<8x1xf32> to vector<8x8xf32>
    %55 = arith.subf %51, %54 : vector<8x8xf32>
    %56 = math.exp %55 : vector<8x8xf32>
    %cst_31 = arith.constant dense<0.000000e+00> : vector<8xf32>
    %57 = vector.multi_reduction <add>, %56, %cst_31 [1] : vector<8x8xf32> to vector<8xf32>
    %58 = vector.shape_cast %57 : vector<8xf32> to vector<8x1xf32>
    %59 = arith.truncf %56 : vector<8x8xf32> to vector<8x8xbf16>
    %c0_32 = arith.constant 0 : index
    %c1_33 = arith.constant 1 : index
    %c0_34 = arith.constant 0 : index
    %c0_35 = arith.constant 0 : index
    %60 = vector.load %arg4[%c0_32, %c1_33, %c0_34, %c0_35] : memref<1x4x8x8xbf16, #tpu.memory_space<vmem>>, vector<1x1x8x8xbf16>
    %61 = vector.shape_cast %60 : vector<1x1x8x8xbf16> to vector<8x8xbf16>
    %cst_36 = arith.constant dense<0.000000e+00> : vector<8x8xf32>
    %62 = tpu.matmul %59, %61, %cst_36 {dimension_numbers = #tpu.dot_dimension_numbers<[1], [0], [0], [1], [0, 0, 1, 1], [], []>} : vector<8x8xbf16>, vector<8x8xbf16>, vector<8x8xf32> -> vector<8x8xf32>
    %63 = tpu.reciprocal %58 {approx = true} : vector<8x1xf32> -> vector<8x1xf32>
    %64 = vector.broadcast %63 : vector<8x1xf32> to vector<8x8xf32>
    %65 = arith.mulf %62, %64 : vector<8x8xf32>
    %66 = arith.truncf %65 : vector<8x8xf32> to vector<8x8xbf16>
    %c0_37 = arith.constant 0 : index
    %c8 = arith.constant 8 : index
    %67 = vector.load %arg10[%c0_37, %c8] : memref<8x32xbf16, #tpu.memory_space<vmem>>, vector<8x8xbf16>
    tpu.vector_store %arg10[%c0_37, %c8], %66 {strides = array<i32>} : memref<8x32xbf16, #tpu.memory_space<vmem>>, vector<8x8xbf16>,
    %68 = vector.extract_strided_slice %27 {offsets = [0, 16], sizes = [8, 8], strides = [1, 1]} : vector<8x32xbf16> to vector<8x8xbf16>
    %c0_38 = arith.constant 0 : index
    %c2 = arith.constant 2 : index
    %c0_39 = arith.constant 0 : index
    %c0_40 = arith.constant 0 : index
    %69 = vector.load %arg3[%c0_38, %c2, %c0_39, %c0_40] : memref<1x4x8x8xbf16, #tpu.memory_space<vmem>>, vector<1x1x8x8xbf16>
    %70 = vector.shape_cast %69 : vector<1x1x8x8xbf16> to vector<8x8xbf16>
    %cst_41 = arith.constant dense<0.000000e+00> : vector<8x8xf32>
    %71 = tpu.matmul %68, %70, %cst_41 {dimension_numbers = #tpu.dot_dimension_numbers<[1], [0], [0], [1], [0, 0, 1, 1], [], []>} : vector<8x8xbf16>, vector<8x8xbf16>, vector<8x8xf32> -> vector<8x8xf32>
    %cst_42 = arith.constant dense<0xFF800000> : vector<8xf32>
    %72 = vector.multi_reduction <maximumf>, %71, %cst_42 [1] : vector<8x8xf32> to vector<8xf32>
    %73 = vector.shape_cast %72 : vector<8xf32> to vector<8x1xf32>
    %74 = vector.broadcast %73 : vector<8x1xf32> to vector<8x8xf32>
    %75 = arith.subf %71, %74 : vector<8x8xf32>
    %76 = math.exp %75 : vector<8x8xf32>
    %cst_43 = arith.constant dense<0.000000e+00> : vector<8xf32>
    %77 = vector.multi_reduction <add>, %76, %cst_43 [1] : vector<8x8xf32> to vector<8xf32>
    %78 = vector.shape_cast %77 : vector<8xf32> to vector<8x1xf32>
    %79 = arith.truncf %76 : vector<8x8xf32> to vector<8x8xbf16>
    %c0_44 = arith.constant 0 : index
    %c2_45 = arith.constant 2 : index
    %c0_46 = arith.constant 0 : index
    %c0_47 = arith.constant 0 : index
    %80 = vector.load %arg4[%c0_44, %c2_45, %c0_46, %c0_47] : memref<1x4x8x8xbf16, #tpu.memory_space<vmem>>, vector<1x1x8x8xbf16>
    %81 = vector.shape_cast %80 : vector<1x1x8x8xbf16> to vector<8x8xbf16>
    %cst_48 = arith.constant dense<0.000000e+00> : vector<8x8xf32>
    %82 = tpu.matmul %79, %81, %cst_48 {dimension_numbers = #tpu.dot_dimension_numbers<[1], [0], [0], [1], [0, 0, 1, 1], [], []>} : vector<8x8xbf16>, vector<8x8xbf16>, vector<8x8xf32> -> vector<8x8xf32>
    %83 = tpu.reciprocal %78 {approx = true} : vector<8x1xf32> -> vector<8x1xf32>
    %84 = vector.broadcast %83 : vector<8x1xf32> to vector<8x8xf32>
    %85 = arith.mulf %82, %84 : vector<8x8xf32>
    %86 = arith.truncf %85 : vector<8x8xf32> to vector<8x8xbf16>
    %c0_49 = arith.constant 0 : index
    %c16 = arith.constant 16 : index
    %87 = vector.load %arg10[%c0_49, %c16] : memref<8x32xbf16, #tpu.memory_space<vmem>>, vector<8x8xbf16>
    tpu.vector_store %arg10[%c0_49, %c16], %86 {strides = array<i32>} : memref<8x32xbf16, #tpu.memory_space<vmem>>, vector<8x8xbf16>,
    %88 = vector.extract_strided_slice %27 {offsets = [0, 24], sizes = [8, 8], strides = [1, 1]} : vector<8x32xbf16> to vector<8x8xbf16>
    %c0_50 = arith.constant 0 : index
    %c3 = arith.constant 3 : index
    %c0_51 = arith.constant 0 : index
    %c0_52 = arith.constant 0 : index
    %89 = vector.load %arg3[%c0_50, %c3, %c0_51, %c0_52] : memref<1x4x8x8xbf16, #tpu.memory_space<vmem>>, vector<1x1x8x8xbf16>
    %90 = vector.shape_cast %89 : vector<1x1x8x8xbf16> to vector<8x8xbf16>
    %cst_53 = arith.constant dense<0.000000e+00> : vector<8x8xf32>
    %91 = tpu.matmul %88, %90, %cst_53 {dimension_numbers = #tpu.dot_dimension_numbers<[1], [0], [0], [1], [0, 0, 1, 1], [], []>} : vector<8x8xbf16>, vector<8x8xbf16>, vector<8x8xf32> -> vector<8x8xf32>
    %cst_54 = arith.constant dense<0xFF800000> : vector<8xf32>
    %92 = vector.multi_reduction <maximumf>, %91, %cst_54 [1] : vector<8x8xf32> to vector<8xf32>
    %93 = vector.shape_cast %92 : vector<8xf32> to vector<8x1xf32>
    %94 = vector.broadcast %93 : vector<8x1xf32> to vector<8x8xf32>
    %95 = arith.subf %91, %94 : vector<8x8xf32>
    %96 = math.exp %95 : vector<8x8xf32>
    %cst_55 = arith.constant dense<0.000000e+00> : vector<8xf32>
    %97 = vector.multi_reduction <add>, %96, %cst_55 [1] : vector<8x8xf32> to vector<8xf32>
    %98 = vector.shape_cast %97 : vector<8xf32> to vector<8x1xf32>
    %99 = arith.truncf %96 : vector<8x8xf32> to vector<8x8xbf16>
    %c0_56 = arith.constant 0 : index
    %c3_57 = arith.constant 3 : index
    %c0_58 = arith.constant 0 : index
    %c0_59 = arith.constant 0 : index
    %100 = vector.load %arg4[%c0_56, %c3_57, %c0_58, %c0_59] : memref<1x4x8x8xbf16, #tpu.memory_space<vmem>>, vector<1x1x8x8xbf16>
    %101 = vector.shape_cast %100 : vector<1x1x8x8xbf16> to vector<8x8xbf16>
    %cst_60 = arith.constant dense<0.000000e+00> : vector<8x8xf32>
    %102 = tpu.matmul %99, %101, %cst_60 {dimension_numbers = #tpu.dot_dimension_numbers<[1], [0], [0], [1], [0, 0, 1, 1], [], []>} : vector<8x8xbf16>, vector<8x8xbf16>, vector<8x8xf32> -> vector<8x8xf32>
    %103 = tpu.reciprocal %98 {approx = true} : vector<8x1xf32> -> vector<8x1xf32>
    %104 = vector.broadcast %103 : vector<8x1xf32> to vector<8x8xf32>
    %105 = arith.mulf %102, %104 : vector<8x8xf32>
    %106 = arith.truncf %105 : vector<8x8xf32> to vector<8x8xbf16>
    %c0_61 = arith.constant 0 : index
    %c24 = arith.constant 24 : index
    %107 = vector.load %arg10[%c0_61, %c24] : memref<8x32xbf16, #tpu.memory_space<vmem>>, vector<8x8xbf16>
    tpu.vector_store %arg10[%c0_61, %c24], %106 {strides = array<i32>} : memref<8x32xbf16, #tpu.memory_space<vmem>>, vector<8x8xbf16>,
    %c0_62 = arith.constant 0 : index
    %c0_63 = arith.constant 0 : index
    %108 = vector.load %arg10[%c0_62, %c0_63] : memref<8x32xbf16, #tpu.memory_space<vmem>>, vector<8x32xbf16>
    %c0_64 = arith.constant 0 : index
    %c0_65 = arith.constant 0 : index
    %109 = vector.load %arg7[%c0_64, %c0_65] : memref<32x32xbf16, #tpu.memory_space<vmem>>, vector<32x32xbf16>
    %cst_66 = arith.constant dense<0.000000e+00> : vector<8x32xf32>
    %110 = tpu.matmul %108, %109, %cst_66 {dimension_numbers = #tpu.dot_dimension_numbers<[1], [0], [0], [1], [0, 0, 1, 1], [], []>} : vector<8x32xbf16>, vector<32x32xbf16>, vector<8x32xf32> -> vector<8x32xf32>
    %c0_67 = arith.constant 0 : index
    %c0_68 = arith.constant 0 : index
    %111 = vector.load %arg8[%c0_67, %c0_68] : memref<1x32xf32, #tpu.memory_space<vmem>>, vector<1x32xf32>
    %112 = vector.broadcast %111 : vector<1x32xf32> to vector<8x32xf32>
    %113 = arith.addf %110, %112 : vector<8x32xf32>
    %c0_69 = arith.constant 0 : index
    %c0_70 = arith.constant 0 : index
    %c0_71 = arith.constant 0 : index
    %114 = vector.load %arg9[%c0_69, %c0_70, %c0_71] : memref<1x8x32xf32, #tpu.memory_space<vmem>>, vector<1x8x32xf32>
    %115 = vector.shape_cast %114 : vector<1x8x32xf32> to vector<8x32xf32>
    %116 = vector.shape_cast %113 : vector<8x32xf32> to vector<1x8x32xf32>
    tpu.vector_store %arg9[%c0_69, %c0_70, %c0_71], %116 {strides = array<i32>} : memref<1x8x32xf32, #tpu.memory_space<vmem>>, vector<1x8x32xf32>,
    return
  }
  func.func @transform_0(%arg0: i32, %arg1: i32) -> (i32, i32, i32) {
    %c0_i32 = arith.constant 0 : i32
    %c0_i32_0 = arith.constant 0 : i32
    return %arg0, %arg1, %c0_i32 : i32, i32, i32
  }
  func.func @transform_1(%arg0: i32, %arg1: i32) -> (i32, i32, i32, i32) {
    %c0_i32 = arith.constant 0 : i32
    %c0_i32_0 = arith.constant 0 : i32
    %c0_i32_1 = arith.constant 0 : i32
    %c0_i32_2 = arith.constant 0 : i32
    return %arg0, %c0_i32, %c0_i32_0, %c0_i32_1 : i32, i32, i32, i32
  }
  func.func @transform_2(%arg0: i32, %arg1: i32) -> (i32, i32, i32, i32) {
    %c0_i32 = arith.constant 0 : i32
    %c0_i32_0 = arith.constant 0 : i32
    %c0_i32_1 = arith.constant 0 : i32
    %c0_i32_2 = arith.constant 0 : i32
    return %arg0, %c0_i32, %c0_i32_0, %c0_i32_1 : i32, i32, i32, i32
  }
  func.func @transform_3(%arg0: i32, %arg1: i32) -> (i32, i32) {
    %c0_i32 = arith.constant 0 : i32
    %c0_i32_0 = arith.constant 0 : i32
    %c0_i32_1 = arith.constant 0 : i32
    return %c0_i32, %c0_i32_0 : i32, i32
  }
  func.func @transform_4(%arg0: i32, %arg1: i32) -> (i32, i32) {
    %c0_i32 = arith.constant 0 : i32
    %c0_i32_0 = arith.constant 0 : i32
    %c0_i32_1 = arith.constant 0 : i32
    return %c0_i32, %c0_i32_0 : i32, i32
  }
  func.func @transform_5(%arg0: i32, %arg1: i32) -> (i32, i32) {
    %c0_i32 = arith.constant 0 : i32
    %c0_i32_0 = arith.constant 0 : i32
    %c0_i32_1 = arith.constant 0 : i32
    return %c0_i32, %c0_i32_0 : i32, i32
  }
  func.func @transform_6(%arg0: i32, %arg1: i32) -> (i32, i32) {
    %c0_i32 = arith.constant 0 : i32
    %c0_i32_0 = arith.constant 0 : i32
    %c0_i32_1 = arith.constant 0 : i32
    return %c0_i32, %c0_i32_0 : i32, i32
  }
  func.func @transform_7(%arg0: i32, %arg1: i32) -> (i32, i32, i32) {
    %c0_i32 = arith.constant 0 : i32
    %c0_i32_0 = arith.constant 0 : i32
    return %arg0, %arg1, %c0_i32 : i32, i32, i32
  }
}

</mosaic_0001>

<llo_original>
// kernel: tpu_custom_call.1
$region0: #{tpu_custom_call.1}
  #allocation0 [shape = 'u32[]', space=smem, size = 0x4, offset = 0x4, fixed_abs, tag = 'smem constant byte address 0x4 - core index']
  #allocation1 [shape = 'u32[144,128]{1,0:T(1,128)}', space=vmem, size = 0x12000, scoped, tag = 'internal scratch']
  #allocation2 [shape = 'bf16[8,32]{1,0:T(8,128)(2,1)}', space=vmem, size = 0x800, scoped, tag = 'scratch operand']
  %s0 = inlined_call_operand.hbm [shape: bf16[2,8,32], index: 0, kind: input, shape index: {}]
  %s1 = inlined_call_operand.hbm [shape: bf16[2,4,8,8], index: 1, kind: input, shape index: {}]
  %s2 = inlined_call_operand.hbm [shape: bf16[2,4,8,8], index: 2, kind: input, shape index: {}]
  %s3 = inlined_call_operand.hbm [shape: bf16[32,32], index: 3, kind: input, shape index: {}]
  %s4 = inlined_call_operand.vmem [shape: f32[1,32], index: 4, kind: input, shape index: {}]
  %s5 = inlined_call_operand.vmem [shape: bf16[32,32], index: 5, kind: input, shape index: {}]
  %s6 = inlined_call_operand.vmem [shape: f32[1,32], index: 6, kind: input, shape index: {}]
  %s7 = inlined_call_operand.hbm [shape: f32[2,8,32], index: 7, kind: output, shape index: {}]
  %s8 = sld [smem:[#allocation0]]
  $region77: #{tpu_custom_call.1} parent=0
    _
  %s10 = ssub.s32 1, %s8
  %s11 = scalar_select 0, %s10, %s8
  $region1: #{tpu_custom_call.1} parent=0
    #allocation3 [shape = 'u8[4096]{0}', space=vmem, size = 0x1000, scoped, tag = 'input window, operand 0']
    #allocation4 [shape = 's32[2]{0}', space=sflag, size = 0x8, scoped, tag = 'scoped memory for tpu_custom_call.1']
    #allocation5 [shape = 's32[2]{0}', space=sflag, size = 0x8, scoped, tag = 'scoped memory for tpu_custom_call.1']
    #allocation6 [shape = 'u8[16384]{0}', space=vmem, size = 0x4000, scoped, tag = 'input window, operand 1']
    #allocation7 [shape = 's32[2]{0}', space=sflag, size = 0x8, scoped, tag = 'scoped memory for tpu_custom_call.1']
    #allocation8 [shape = 'u8[16384]{0}', space=vmem, size = 0x4000, scoped, tag = 'input window, operand 2']
    #allocation9 [shape = 'u8[8192]{0}', space=vmem, size = 0x2000, scoped, tag = 'input window, operand 3, single buffered']
    #allocation10 [shape = 's32[1]{0}', space=sflag, size = 0x4, scoped, tag = 'scoped memory for tpu_custom_call.1']
    #allocation11 [shape = 'u8[8192]{0}', space=vmem, size = 0x2000, scoped, tag = 'output window, operand 0']
    %12 = vsyncpa [#allocation4], 0
    %s13 = scalar_lea.sflag [#allocation4], 1
    %14 = vsyncpa %s13, 0
    %15 = vsyncpa [#allocation7], 0
    %s16 = scalar_lea.sflag [#allocation7], 1
    %17 = vsyncpa %s16, 0
    %18 = vsyncpa [#allocation10], 0
    %19 = vsyncpa [#allocation5], 0
    %s20 = scalar_lea.sflag [#allocation5], 1
    %21 = vsyncpa %s20, 0
    loop: start=0, step=1, limit=4
    $region2: #{tpu_custom_call.1} parent=1 // loop_pre_header
      _
    $region3: #{tpu_custom_call.1} parent=1 // loop_header
      %s23 = sphi 0, %s27
      %p24 = scmp.ge.s32.totalorder %s23, 4
      %s30 = sphi 0, %s42
      %s31 = sphi 0, %s38
      %s32 = sphi 0, %s30
      %s33 = sphi 0, %s31
      %s34 = sphi 0, %s32
      %s35 = sphi 0, %s33
      %s47 = sphi 0, %s49
      %s50 = sphi 0, %s47
      %s51 = sphi 0, %s50
      %s67 = sphi 0, %s51
      %s73 = sphi 0, %s75
      %s76 = sphi 0, %s73
      %s77 = sphi 0, %s76
      %s93 = sphi 0, %s77
      %s99 = sphi 0, %s101
      %s102 = sphi 0, %s99
      %s103 = sphi 0, %s102
      %s119 = sphi 0, %s103
      %s123 = sphi 0, %s123
      %s125 = sphi 0, %s123
      %s126 = sphi 0, %s125
      %s140 = sphi 0, %s126
      %s144 = sphi 0, %s144
      %s146 = sphi 0, %s144
      %s147 = sphi 0, %s146
      %s161 = sphi 0, %s147
      %s165 = sphi 0, %s165
      %s167 = sphi 0, %s165
      %s168 = sphi 0, %s167
      %s182 = sphi 0, %s168
      %s186 = sphi 0, %s186
      %s188 = sphi 0, %s186
      %s189 = sphi 0, %s188
      %s203 = sphi 0, %s189
      %s211 = sphi 0, %s213
      %s214 = sphi 0, %s211
      %s215 = sphi 0, %s214
      %s231 = sphi 0, %s215
    $region4: #{tpu_custom_call.1} parent=1 // loop_header_branch
      %26 = sbr.rel (%p24) target = $region8
    $region5: #{tpu_custom_call.1} parent=1 // loop_body
      %s28 = ssub.s32 %s23, 1
      %s29 = ssub.s32 %s23, 2
      %s36 = sadd.s32 1, %s31
      %p37 = scmp.ge.s32.totalorder %s36, 1
      %s38 = scalar_select %p37, 0, %s36
      %s39 = sadd.s32 1, %s30
      %s40 = scalar_select %p37, %s39, %s30
      %p41 = scmp.ge.s32.totalorder %s40, 2
      %s42 = scalar_select %p41, 0, %s40
      %s43 = ssub.s32 %s30, %s42
      %s44 = ssub.s32 %s31, %s38
      %s45 = sor.u32 %s43, %s44
      %p46 = scmp.eq.s32.totalorder %s45, 0
      %s48 = sadd.s32 %s47, 1
      %s49 = scalar_select %p46, %s47, %s48
      %p52 = pneg %p46
      %p53 = scmp.eq.s32.totalorder %s23, 1
      %p54 = por %p52, %p53
      %p55 = scmp.ne.s32.totalorder %s47, %s50
      %p56 = scmp.eq.s32.totalorder %s23, 0
      %p57 = por %p55, %p56
      %p58 = scmp.ne.s32.totalorder %s47, %s50
      %p59 = scmp.eq.s32.totalorder %s28, 1
      %p60 = por %p58, %p59
      %p61 = scmp.ne.s32.totalorder %s50, %s51
      %p62 = scmp.eq.s32.totalorder %s28, 0
      %p63 = por %p61, %p62
      %p64 = scmp.ne.s32.totalorder %s50, %s51
      %p65 = scmp.eq.s32.totalorder %s29, 1
      %p66 = por %p64, %p65
      %p68 = scmp.ne.s32.totalorder %s51, %s67
      %p69 = scmp.eq.s32.totalorder %s29, 0
      %p70 = por %p68, %p69
      %s71 = ssub.s32 %s30, %s42
      %p72 = scmp.eq.s32.totalorder %s71, 0
      %s74 = sadd.s32 %s73, 1
      %s75 = scalar_select %p72, %s73, %s74
      %p78 = pneg %p72
      %p79 = scmp.eq.s32.totalorder %s23, 1
      %p80 = por %p78, %p79
      %p81 = scmp.ne.s32.totalorder %s73, %s76
      %p82 = scmp.eq.s32.totalorder %s23, 0
      %p83 = por %p81, %p82
      %p84 = scmp.ne.s32.totalorder %s73, %s76
      %p85 = scmp.eq.s32.totalorder %s28, 1
      %p86 = por %p84, %p85
      %p87 = scmp.ne.s32.totalorder %s76, %s77
      %p88 = scmp.eq.s32.totalorder %s28, 0
      %p89 = por %p87, %p88
      %p90 = scmp.ne.s32.totalorder %s76, %s77
      %p91 = scmp.eq.s32.totalorder %s29, 1
      %p92 = por %p90, %p91
      %p94 = scmp.ne.s32.totalorder %s77, %s93
      %p95 = scmp.eq.s32.totalorder %s29, 0
      %p96 = por %p94, %p95
      %s97 = ssub.s32 %s30, %s42
      %p98 = scmp.eq.s32.totalorder %s97, 0
      %s100 = sadd.s32 %s99, 1
      %s101 = scalar_select %p98, %s99, %s100
      %p104 = pneg %p98
      %p105 = scmp.eq.s32.totalorder %s23, 1
      %p106 = por %p104, %p105
      %p107 = scmp.ne.s32.totalorder %s99, %s102
      %p108 = scmp.eq.s32.totalorder %s23, 0
      %p109 = por %p107, %p108
      %p110 = scmp.ne.s32.totalorder %s99, %s102
      %p111 = scmp.eq.s32.totalorder %s28, 1
      %p112 = por %p110, %p111
      %p113 = scmp.ne.s32.totalorder %s102, %s103
      %p114 = scmp.eq.s32.totalorder %s28, 0
      %p115 = por %p113, %p114
      %p116 = scmp.ne.s32.totalorder %s102, %s103
      %p117 = scmp.eq.s32.totalorder %s29, 1
      %p118 = por %p116, %p117
      %p120 = scmp.ne.s32.totalorder %s103, %s119
      %p121 = scmp.eq.s32.totalorder %s29, 0
      %p122 = por %p120, %p121
      %s124 = sadd.s32 %s123, 1
      %p127 = scmp.eq.s32.totalorder %s23, 1
      %p128 = scmp.ne.s32.totalorder %s123, %s125
      %p129 = scmp.eq.s32.totalorder %s23, 0
      %p130 = por %p128, %p129
      %p131 = scmp.ne.s32.totalorder %s123, %s125
      %p132 = scmp.eq.s32.totalorder %s28, 1
      %p133 = por %p131, %p132
      %p134 = scmp.ne.s32.totalorder %s125, %s126
      %p135 = scmp.eq.s32.totalorder %s28, 0
      %p136 = por %p134, %p135
      %p137 = scmp.ne.s32.totalorder %s125, %s126
      %p138 = scmp.eq.s32.totalorder %s29, 1
      %p139 = por %p137, %p138
      %p141 = scmp.ne.s32.totalorder %s126, %s140
      %p142 = scmp.eq.s32.totalorder %s29, 0
      %p143 = por %p141, %p142
      %s145 = sadd.s32 %s144, 1
      %p148 = scmp.eq.s32.totalorder %s23, 1
      %p149 = scmp.ne.s32.totalorder %s144, %s146
      %p150 = scmp.eq.s32.totalorder %s23, 0
      %p151 = por %p149, %p150
      %p152 = scmp.ne.s32.totalorder %s144, %s146
      %p153 = scmp.eq.s32.totalorder %s28, 1
      %p154 = por %p152, %p153
      %p155 = scmp.ne.s32.totalorder %s146, %s147
      %p156 = scmp.eq.s32.totalorder %s28, 0
      %p157 = por %p155, %p156
      %p158 = scmp.ne.s32.totalorder %s146, %s147
      %p159 = scmp.eq.s32.totalorder %s29, 1
      %p160 = por %p158, %p159
      %p162 = scmp.ne.s32.totalorder %s147, %s161
      %p163 = scmp.eq.s32.totalorder %s29, 0
      %p164 = por %p162, %p163
      %s166 = sadd.s32 %s165, 1
      %p169 = scmp.eq.s32.totalorder %s23, 1
      %p170 = scmp.ne.s32.totalorder %s165, %s167
      %p171 = scmp.eq.s32.totalorder %s23, 0
      %p172 = por %p170, %p171
      %p173 = scmp.ne.s32.totalorder %s165, %s167
      %p174 = scmp.eq.s32.totalorder %s28, 1
      %p175 = por %p173, %p174
      %p176 = scmp.ne.s32.totalorder %s167, %s168
      %p177 = scmp.eq.s32.totalorder %s28, 0
      %p178 = por %p176, %p177
      %p179 = scmp.ne.s32.totalorder %s167, %s168
      %p180 = scmp.eq.s32.totalorder %s29, 1
      %p181 = por %p179, %p180
      %p183 = scmp.ne.s32.totalorder %s168, %s182
      %p184 = scmp.eq.s32.totalorder %s29, 0
      %p185 = por %p183, %p184
      %s187 = sadd.s32 %s186, 1
      %p190 = scmp.eq.s32.totalorder %s23, 1
      %p191 = scmp.ne.s32.totalorder %s186, %s188
      %p192 = scmp.eq.s32.totalorder %s23, 0
      %p193 = por %p191, %p192
      %p194 = scmp.ne.s32.totalorder %s186, %s188
      %p195 = scmp.eq.s32.totalorder %s28, 1
      %p196 = por %p194, %p195
      %p197 = scmp.ne.s32.totalorder %s188, %s189
      %p198 = scmp.eq.s32.totalorder %s28, 0
      %p199 = por %p197, %p198
      %p200 = scmp.ne.s32.totalorder %s188, %s189
      %p201 = scmp.eq.s32.totalorder %s29, 1
      %p202 = por %p200, %p201
      %p204 = scmp.ne.s32.totalorder %s189, %s203
      %p205 = scmp.eq.s32.totalorder %s29, 0
      %p206 = por %p204, %p205
      %s207 = ssub.s32 %s30, %s42
      %s208 = ssub.s32 %s31, %s38
      %s209 = sor.u32 %s207, %s208
      %p210 = scmp.eq.s32.totalorder %s209, 0
      %s212 = sadd.s32 %s211, 1
      %s213 = scalar_select %p210, %s211, %s212
      %p216 = pneg %p210
      %p217 = scmp.eq.s32.totalorder %s23, 1
      %p218 = por %p216, %p217
      %p219 = scmp.ne.s32.totalorder %s211, %s214
      %p220 = scmp.eq.s32.totalorder %s23, 0
      %p221 = por %p219, %p220
      %p222 = scmp.ne.s32.totalorder %s211, %s214
      %p223 = scmp.eq.s32.totalorder %s28, 1
      %p224 = por %p222, %p223
      %p225 = scmp.ne.s32.totalorder %s214, %s215
      %p226 = scmp.eq.s32.totalorder %s28, 0
      %p227 = por %p225, %p226
      %p228 = scmp.ne.s32.totalorder %s214, %s215
      %p229 = scmp.eq.s32.totalorder %s29, 1
      %p230 = por %p228, %p229
      %p232 = scmp.ne.s32.totalorder %s215, %s231
      %p233 = scmp.eq.s32.totalorder %s29, 0
      %p234 = por %p232, %p233
      %p235 = scmp.le.s32.totalorder 1, %s23
      %p236 = scmp.lt.s32.totalorder %s23, 3
      %p237 = pnand %p235, %p236
      %p238 = pneg %p237
      // Predicated region
      $region9: #{tpu_custom_call.1} parent=5 // pred_check
        _
      $region10: #{tpu_custom_call.1} parent=5 // pred_check_branch
        %240 = sbr.rel (%p237) target = $region12
      $region11: #{tpu_custom_call.1} parent=5 // pred_region
        %s241 = ssub.s32 %s23, 1
        // Predicated region
        $region13: #{tpu_custom_call.1} parent=11 // pred_check
          %p242 = pneg %p136
        $region14: #{tpu_custom_call.1} parent=11 // pred_check_branch
          %244 = sbr.rel (%p242) target = $region16
        $region15: #{tpu_custom_call.1} parent=11 // pred_region
          %s246 = ssub.s32 256, 256
          %247 = vsyncadd [#allocation10], %s246
          %s248 = sshll.u32 [#allocation9], 4
          %s249 = int_to_ptr.vmem [resolvable:$true] %s248
          %254 = dma.hbm_to_vmem [thread:$0]  %s3, 256, %s249, [#allocation10], 64, 64, 4
        $region16: #{tpu_custom_call.1} parent=11 // pred_fallthru
          _
        // Predicated region
        $region17: #{tpu_custom_call.1} parent=11 // pred_check
          %p255 = pneg %p157
        $region18: #{tpu_custom_call.1} parent=11 // pred_check_branch
          %257 = sbr.rel (%p255) target = $region20
        $region19: #{tpu_custom_call.1} parent=11 // pred_region
          _
        $region20: #{tpu_custom_call.1} parent=11 // pred_fallthru
          _
        // Predicated region
        $region21: #{tpu_custom_call.1} parent=11 // pred_check
          %p258 = pneg %p178
        $region22: #{tpu_custom_call.1} parent=11 // pred_check_branch
          %260 = sbr.rel (%p258) target = $region24
        $region23: #{tpu_custom_call.1} parent=11 // pred_region
          _
        $region24: #{tpu_custom_call.1} parent=11 // pred_fallthru
          _
        // Predicated region
        $region25: #{tpu_custom_call.1} parent=11 // pred_check
          %p261 = pneg %p199
        $region26: #{tpu_custom_call.1} parent=11 // pred_check_branch
          %263 = sbr.rel (%p261) target = $region28
        $region27: #{tpu_custom_call.1} parent=11 // pred_region
          _
        $region28: #{tpu_custom_call.1} parent=11 // pred_fallthru
          _
      $region12: #{tpu_custom_call.1} parent=5 // pred_fallthru
        _
      %p264 = scmp.lt.s32.totalorder %s23, 2
      // Predicated region
      $region29: #{tpu_custom_call.1} parent=5 // pred_check
        %p265 = pneg %p264
      $region30: #{tpu_custom_call.1} parent=5 // pred_check_branch
        %267 = sbr.rel (%p265) target = $region32
      $region31: #{tpu_custom_call.1} parent=5 // pred_region
        // Predicated region
        $region33: #{tpu_custom_call.1} parent=31 // pred_check
          %p268 = pneg %p57
        $region34: #{tpu_custom_call.1} parent=31 // pred_check_branch
          %270 = sbr.rel (%p268) target = $region36
        $region35: #{tpu_custom_call.1} parent=31 // pred_region
          %s271 = sand.u32 %s47, 1
          %s272 = scalar_lea.sflag [#allocation4], %s271
          %s273 = sand.u32 %s47, 1
          %s274 = smul.addr %s273, 4
          %s275 = scalar_lea.vmem [#allocation3], %s274
          %s277 = ssub.s32 64, 64
          %278 = vsyncadd %s272, %s277
          %s279 = sadd.s32 %s31, %s30
          %s280 = smul.addr %s279, 64
          %s281 = scalar_lea.hbm %s0, %s280
          %s283 = sshll.u32 %s275, 4
          %s284 = int_to_ptr.vmem [resolvable:$true] %s283
          %286 = dma.hbm_to_vmem [thread:$0]  %s281, 64, %s284, %s272
        $region36: #{tpu_custom_call.1} parent=31 // pred_fallthru
          _
        // Predicated region
        $region37: #{tpu_custom_call.1} parent=31 // pred_check
          %p287 = pneg %p83
        $region38: #{tpu_custom_call.1} parent=31 // pred_check_branch
          %289 = sbr.rel (%p287) target = $region40
        $region39: #{tpu_custom_call.1} parent=31 // pred_region
          %s290 = sand.u32 %s23, 1
          %s291 = scalar_lea.sflag [#allocation7], %s290
          %s292 = sand.u32 %s73, 1
          %s293 = smul.addr %s292, 16
          %s294 = scalar_lea.vmem [#allocation6], %s293
          %s296 = ssub.s32 256, 256
          %297 = vsyncadd %s291, %s296
          %s298 = smul.addr %s30, 4
          %s299 = smul.addr %s298, 64
          %s300 = scalar_lea.hbm %s1, %s299
          %s301 = sshll.u32 %s294, 4
          %s302 = int_to_ptr.vmem [resolvable:$true] %s301
          %307 = dma.hbm_to_vmem [thread:$0]  %s300, 256, %s302, %s291, 64, 64, 4
        $region40: #{tpu_custom_call.1} parent=31 // pred_fallthru
          _
        // Predicated region
        $region41: #{tpu_custom_call.1} parent=31 // pred_check
          %p308 = pneg %p109
        $region42: #{tpu_custom_call.1} parent=31 // pred_check_branch
          %310 = sbr.rel (%p308) target = $region44
        $region43: #{tpu_custom_call.1} parent=31 // pred_region
          %s311 = sand.u32 %s23, 1
          %s312 = scalar_lea.sflag [#allocation7], %s311
          %s313 = sand.u32 %s99, 1
          %s314 = smul.addr %s313, 16
          %s315 = scalar_lea.vmem [#allocation8], %s314
          %s317 = ssub.s32 256, 256
          %318 = vsyncadd %s312, %s317
          %s319 = smul.addr %s30, 4
          %s320 = smul.addr %s319, 64
          %s321 = scalar_lea.hbm %s2, %s320
          %s322 = sshll.u32 %s315, 4
          %s323 = int_to_ptr.vmem [resolvable:$true] %s322
          %328 = dma.hbm_to_vmem [thread:$0]  %s321, 256, %s323, %s312, 64, 64, 4
        $region44: #{tpu_custom_call.1} parent=31 // pred_fallthru
          _
      $region32: #{tpu_custom_call.1} parent=5 // pred_fallthru
        _
      %p329 = scmp.le.s32.totalorder 1, %s23
      %p330 = scmp.lt.s32.totalorder %s23, 3
      %p331 = pnand %p329, %p330
      %p332 = pneg %p331
      // Predicated region
      $region45: #{tpu_custom_call.1} parent=5 // pred_check
        _
      $region46: #{tpu_custom_call.1} parent=5 // pred_check_branch
        %334 = sbr.rel (%p331) target = $region48
      $region47: #{tpu_custom_call.1} parent=5 // pred_region
        %s335 = ssub.s32 %s23, 1
        %s336 = sand.u32 %s50, 1
        %s337 = scalar_lea.sflag [#allocation4], %s336
        %s338 = sand.u32 %s50, 1
        %s339 = smul.addr %s338, 4
        %s340 = scalar_lea.vmem [#allocation3], %s339
        // Predicated region
        $region49: #{tpu_custom_call.1} parent=47 // pred_check
          %p341 = pneg %p63
        $region50: #{tpu_custom_call.1} parent=47 // pred_check_branch
          %343 = sbr.rel (%p341) target = $region52
        $region51: #{tpu_custom_call.1} parent=47 // pred_region
          %344 = dma.done %s337, 64
        $region52: #{tpu_custom_call.1} parent=47 // pred_fallthru
          _
        %s345 = sand.u32 %s28, 1
        %s346 = scalar_lea.sflag [#allocation7], %s345
        %s347 = sand.u32 %s76, 1
        %s348 = smul.addr %s347, 16
        %s349 = scalar_lea.vmem [#allocation6], %s348
        // Predicated region
        $region53: #{tpu_custom_call.1} parent=47 // pred_check
          %p350 = pneg %p89
        $region54: #{tpu_custom_call.1} parent=47 // pred_check_branch
          %352 = sbr.rel (%p350) target = $region56
        $region55: #{tpu_custom_call.1} parent=47 // pred_region
          %353 = dma.done %s346, 256
        $region56: #{tpu_custom_call.1} parent=47 // pred_fallthru
          _
        %s354 = sand.u32 %s28, 1
        %s355 = scalar_lea.sflag [#allocation7], %s354
        %s356 = sand.u32 %s102, 1
        %s357 = smul.addr %s356, 16
        %s358 = scalar_lea.vmem [#allocation8], %s357
        // Predicated region
        $region57: #{tpu_custom_call.1} parent=47 // pred_check
          %p359 = pneg %p115
        $region58: #{tpu_custom_call.1} parent=47 // pred_check_branch
          %361 = sbr.rel (%p359) target = $region60
        $region59: #{tpu_custom_call.1} parent=47 // pred_region
          %362 = dma.done %s355, 256
        $region60: #{tpu_custom_call.1} parent=47 // pred_fallthru
          _
        // Predicated region
        $region61: #{tpu_custom_call.1} parent=47 // pred_check
          %p363 = pneg %p136
        $region62: #{tpu_custom_call.1} parent=47 // pred_check_branch
          %365 = sbr.rel (%p363) target = $region64
        $region63: #{tpu_custom_call.1} parent=47 // pred_region
          %366 = dma.done [#allocation10], 256
        $region64: #{tpu_custom_call.1} parent=47 // pred_fallthru
          _
        %s367 = sand.u32 %s50, 1
        %s368 = scalar_lea.sflag [#allocation4], %s367
        %s369 = sand.u32 %s50, 1
        %s370 = smul.addr %s369, 4
        %s371 = scalar_lea.vmem [#allocation3], %s370
        %p372 = pneg %p63
        %p373 = pneg %p60
        %s374 = sand.u32 %s28, 1
        %s375 = scalar_lea.sflag [#allocation7], %s374
        %s376 = sand.u32 %s76, 1
        %s377 = smul.addr %s376, 16
        %s378 = scalar_lea.vmem [#allocation6], %s377
        %p379 = pneg %p89
        %p380 = pneg %p86
        %s381 = sand.u32 %s28, 1
        %s382 = scalar_lea.sflag [#allocation7], %s381
        %s383 = sand.u32 %s102, 1
        %s384 = smul.addr %s383, 16
        %s385 = scalar_lea.vmem [#allocation8], %s384
        %p386 = pneg %p115
        %p387 = pneg %p112
        %p388 = pneg %p136
        %p389 = pneg %p133
        %p390 = pneg %p157
        %p391 = pneg %p154
        %p392 = pneg %p178
        %p393 = pneg %p175
        %p394 = pneg %p199
        %p395 = pneg %p196
        %p396 = pneg %p227
        %p397 = pneg %p224
        %s398 = sand.u32 %s214, 1
        %s399 = scalar_lea.sflag [#allocation5], %s398
        %s400 = sand.u32 %s214, 1
        %s401 = smul.addr %s400, 8
        %s402 = scalar_lea.vmem [#allocation11], %s401
        %v404 = vld [vmem:[%s340] sm:$0xf]
        %v405 = vld [vmem:[#allocation9] sm:$0xf]
        %v406 = vld [vmem:[#allocation9 + $0x4] sm:$0xf]
        %v407 = vld [vmem:[#allocation9 + $0x8] sm:$0xf]
        %v408 = vld [vmem:[#allocation9 + $0xc] sm:$0xf]
        %v409 = vld [vmem:[%s4] sm:$0x1]
        %v411 = vlaneseq
        %v412 = vshrl.u32 %v411, 7
        %v413 = vsub.s32 0, %v412
        %v414 = vrot.slane %v409, %v413
        %v420 = vunpack.c.l.b16 %v405
        %v421 = vunpack.c.l.b16 %v406
        %v422 = vunpack.c.l.b16 %v407
        %v423 = vunpack.c.l.b16 %v408
        %v424 = vpack.c.b16 %v421, %v420
        %v425 = vpack.c.b16 %v423, %v422
        %vm428 = vcmask 261120
        %v430 = vsel %vm428, %v404, 0
        %432 = vmatprep.subr.bf16.mxu0 0
        %433 = vmatpush1.bf16.msra.mxu0 %v424
        %434 = vmatprep.subr.bf16.mxu0 0
        %435 = vmatpush1.bf16.msra.mxu0 %v425
        %436 = vmatprep.subr.bf16.mxu0 0
        %437 = vmatpush1.bf16.msra.mxu0 0
        %438 = vmatprep.subr.bf16.mxu0 0
        %439 = vmatpush1.bf16.msra.mxu0 0
        %440 = vmatprep.subr.bf16.mxu0 0
        %441 = vmatpush1.bf16.msra.mxu0 0
        %442 = vmatprep.subr.bf16.mxu0 0
        %443 = vmatpush1.bf16.msra.mxu0 0
        %444 = vmatprep.subr.bf16.mxu0 0
        %445 = vmatpush1.bf16.msra.mxu0 0
        %446 = vmatprep.subr.bf16.mxu0 0
        %447 = vmatpush1.bf16.msra.mxu0 0
        %448 = vmatprep.subr.bf16.mxu0 0
        %449 = vmatpush1.bf16.msra.mxu0 0
        %450 = vmatprep.subr.bf16.mxu0 0
        %451 = vmatpush1.bf16.msra.mxu0 0
        %452 = vmatprep.subr.bf16.mxu0 0
        %453 = vmatpush1.bf16.msra.mxu0 0
        %454 = vmatprep.subr.bf16.mxu0 0
        %455 = vmatpush1.bf16.msra.mxu0 0
        %456 = vmatprep.subr.bf16.mxu0 0
        %457 = vmatpush1.bf16.msra.mxu0 0
        %458 = vmatprep.subr.bf16.mxu0 0
        %459 = vmatpush1.bf16.msra.mxu0 0
        %460 = vmatprep.subr.bf16.mxu0 0
        %461 = vmatpush1.bf16.msra.mxu0 0
        %462 = vmatprep.subr.bf16.mxu0 0
        %463 = vmatpush1.bf16.msra.mxu0 0
        %464 = vmatprep.mubr.bf16.mxu0 0
        %465 = vmatmul.mubr.bf16.gmra.mrb[0].mxu0 %v430
        %v466 = vpop.f32.mrb[0].mxu0
        %v467 = vadd.f32 %v414, %v466
        %v468 = vpop.f32.mrb[0].mxu0
        %v469 = vpop.f32.mrb[0].mxu0
        %v470 = vpop.f32.mrb[0].mxu0
        %471 = vdwg.mxu0
        %v472 = vsel %vm428, %v467, 0.0
        %473 = vadd.xlane.f32.xlu0 %v472
        %v474 = vpop.xlane.xlu0 %473
        %v475 = vrcp.pop 32.0
        %v476 = vmul.f32 %v474, %v475
        %v477 = vsub.f32 %v467, %v476
        %v478 = vmul.f32 %v477, %v477
        %v479 = vsel %vm428, %v478, 0.0
        %480 = vadd.xlane.f32.xlu0 %v479
        %v481 = vpop.xlane.xlu0 %480
        %v482 = vmul.f32 %v481, %v475
        %v483 = vadd.f32 %v482, 1e-05
        %v484 = vrsqrt.pop %v483
        %v485 = vmul.f32 %v484, 0.35355338
        %v486 = vmul.f32 %v477, %v485
        %v487 = vpack.c.bf16 %v486, %v486
        %v488 = vld [vmem:[%s349] sm:$0xf]
        %vm489 = vcmask 64512
        %v491 = vsel %vm489, %v487, 0
        %vm493 = vcmask 1043456
        %v495 = vsel %vm493, %v488, 0
        %497 = vmatprep.subr.bf16.mxu0 0
        %498 = vmatpush1.bf16.msra.mxu0 %v495
        %499 = vmatprep.subr.bf16.mxu0 0
        %500 = vmatpush1.bf16.msra.mxu0 0
        %501 = vmatprep.subr.bf16.mxu0 0
        %502 = vmatpush1.bf16.msra.mxu0 0
        %503 = vmatprep.subr.bf16.mxu0 0
        %504 = vmatpush1.bf16.msra.mxu0 0
        %505 = vmatprep.subr.bf16.mxu0 0
        %506 = vmatpush1.bf16.msra.mxu0 0
        %507 = vmatprep.subr.bf16.mxu0 0
        %508 = vmatpush1.bf16.msra.mxu0 0
        %509 = vmatprep.subr.bf16.mxu0 0
        %510 = vmatpush1.bf16.msra.mxu0 0
        %511 = vmatprep.subr.bf16.mxu0 0
        %512 = vmatpush1.bf16.msra.mxu0 0
        %513 = vmatprep.subr.bf16.mxu0 0
        %514 = vmatpush1.bf16.msra.mxu0 0
        %515 = vmatprep.subr.bf16.mxu0 0
        %516 = vmatpush1.bf16.msra.mxu0 0
        %517 = vmatprep.subr.bf16.mxu0 0
        %518 = vmatpush1.bf16.msra.mxu0 0
        %519 = vmatprep.subr.bf16.mxu0 0
        %520 = vmatpush1.bf16.msra.mxu0 0
        %521 = vmatprep.subr.bf16.mxu0 0
        %522 = vmatpush1.bf16.msra.mxu0 0
        %523 = vmatprep.subr.bf16.mxu0 0
        %524 = vmatpush1.bf16.msra.mxu0 0
        %525 = vmatprep.subr.bf16.mxu0 0
        %526 = vmatpush1.bf16.msra.mxu0 0
        %527 = vmatprep.subr.bf16.mxu0 0
        %528 = vmatpush1.bf16.msra.mxu0 0
        %529 = vmatprep.mubr.bf16.mxu0 0
        %530 = vmatmul.mubr.bf16.gmra.mrb[0].mxu0 %v491
        %v531 = vpop.f32.mrb[0].mxu0
        %v532 = vadd.f32 0.0, %v531
        %v533 = vpop.f32.mrb[0].mxu0
        %v534 = vpop.f32.mrb[0].mxu0
        %v535 = vpop.f32.mrb[0].mxu0
        %536 = vdwg.mxu0
        %v537 = vsel %vm489, %v532, -inf
        %538 = vmax.xlane.f32.xlu0 %v537
        %v539 = vpop.xlane.xlu0 %538
        %v540 = vsub.f32 %v532, %v539
        %v541 = vmul.f32 %v540, 1.442695
        %v542 = vpow.pop %v541
        %v543 = vsel %vm489, %v542, 0.0
        %544 = vadd.xlane.f32.xlu0 %v543
        %v545 = vpop.xlane.xlu0 %544
        %v546 = vpack.c.bf16 %v542, %v542
        %v547 = vld [vmem:[%s358] sm:$0xf]
        %v549 = vsel %vm489, %v546, 0
        %v552 = vsel %vm493, %v547, 0
        %554 = vmatprep.subr.bf16.mxu0 0
        %555 = vmatpush1.bf16.msra.mxu0 %v552
        %556 = vmatprep.subr.bf16.mxu0 0
        %557 = vmatpush1.bf16.msra.mxu0 0
        %558 = vmatprep.subr.bf16.mxu0 0
        %559 = vmatpush1.bf16.msra.mxu0 0
        %560 = vmatprep.subr.bf16.mxu0 0
        %561 = vmatpush1.bf16.msra.mxu0 0
        %562 = vmatprep.subr.bf16.mxu0 0
        %563 = vmatpush1.bf16.msra.mxu0 0
        %564 = vmatprep.subr.bf16.mxu0 0
        %565 = vmatpush1.bf16.msra.mxu0 0
        %566 = vmatprep.subr.bf16.mxu0 0
        %567 = vmatpush1.bf16.msra.mxu0 0
        %568 = vmatprep.subr.bf16.mxu0 0
        %569 = vmatpush1.bf16.msra.mxu0 0
        %570 = vmatprep.subr.bf16.mxu0 0
        %571 = vmatpush1.bf16.msra.mxu0 0
        %572 = vmatprep.subr.bf16.mxu0 0
        %573 = vmatpush1.bf16.msra.mxu0 0
        %574 = vmatprep.subr.bf16.mxu0 0
        %575 = vmatpush1.bf16.msra.mxu0 0
        %576 = vmatprep.subr.bf16.mxu0 0
        %577 = vmatpush1.bf16.msra.mxu0 0
        %578 = vmatprep.subr.bf16.mxu0 0
        %579 = vmatpush1.bf16.msra.mxu0 0
        %580 = vmatprep.subr.bf16.mxu0 0
        %581 = vmatpush1.bf16.msra.mxu0 0
        %582 = vmatprep.subr.bf16.mxu0 0
        %583 = vmatpush1.bf16.msra.mxu0 0
        %584 = vmatprep.subr.bf16.mxu0 0
        %585 = vmatpush1.bf16.msra.mxu0 0
        %586 = vmatprep.mubr.bf16.mxu0 0
        %587 = vmatmul.mubr.bf16.gmra.mrb[0].mxu0 %v549
        %v588 = vpop.f32.mrb[0].mxu0
        %v589 = vadd.f32 0.0, %v588
        %v590 = vpop.f32.mrb[0].mxu0
        %v591 = vpop.f32.mrb[0].mxu0
        %v592 = vpop.f32.mrb[0].mxu0
        %593 = vdwg.mxu0
        %v594 = vrcp.pop %v545
        %v595 = vmul.f32 %v589, %v594
        %v596 = vpack.c.bf16 %v595, %v595
        %vm597 = vcmask 60416
        %598 = vst.msk [vmem:[#allocation2] sm:$0xf] %vm597, %v596
        %s599 = scalar_lea.vmem %s349, 4 [#allocation6]
        %v600 = vld [vmem:[%s599] sm:$0xf]
        %602 = vrot.lane.b32.xlu0 %v487, 120
        %v603 = vpop.permute.xlu0 %602
        %v605 = vsel %vm489, %v603, 0
        %v608 = vsel %vm493, %v600, 0
        %610 = vmatprep.subr.bf16.mxu0 0
        %611 = vmatpush1.bf16.msra.mxu0 %v608
        %612 = vmatprep.subr.bf16.mxu0 0
        %613 = vmatpush1.bf16.msra.mxu0 0
        %614 = vmatprep.subr.bf16.mxu0 0
        %615 = vmatpush1.bf16.msra.mxu0 0
        %616 = vmatprep.subr.bf16.mxu0 0
        %617 = vmatpush1.bf16.msra.mxu0 0
        %618 = vmatprep.subr.bf16.mxu0 0
        %619 = vmatpush1.bf16.msra.mxu0 0
        %620 = vmatprep.subr.bf16.mxu0 0
        %621 = vmatpush1.bf16.msra.mxu0 0
        %622 = vmatprep.subr.bf16.mxu0 0
        %623 = vmatpush1.bf16.msra.mxu0 0
        %624 = vmatprep.subr.bf16.mxu0 0
        %625 = vmatpush1.bf16.msra.mxu0 0
        %626 = vmatprep.subr.bf16.mxu0 0
        %627 = vmatpush1.bf16.msra.mxu0 0
        %628 = vmatprep.subr.bf16.mxu0 0
        %629 = vmatpush1.bf16.msra.mxu0 0
        %630 = vmatprep.subr.bf16.mxu0 0
        %631 = vmatpush1.bf16.msra.mxu0 0
        %632 = vmatprep.subr.bf16.mxu0 0
        %633 = vmatpush1.bf16.msra.mxu0 0
        %634 = vmatprep.subr.bf16.mxu0 0
        %635 = vmatpush1.bf16.msra.mxu0 0
        %636 = vmatprep.subr.bf16.mxu0 0
        %637 = vmatpush1.bf16.msra.mxu0 0
        %638 = vmatprep.subr.bf16.mxu0 0
        %639 = vmatpush1.bf16.msra.mxu0 0
        %640 = vmatprep.subr.bf16.mxu0 0
        %641 = vmatpush1.bf16.msra.mxu0 0
        %642 = vmatprep.mubr.bf16.mxu0 0
        %643 = vmatmul.mubr.bf16.gmra.mrb[0].mxu0 %v605
        %v644 = vpop.f32.mrb[0].mxu0
        %v645 = vadd.f32 0.0, %v644
        %v646 = vpop.f32.mrb[0].mxu0
        %v647 = vpop.f32.mrb[0].mxu0
        %v648 = vpop.f32.mrb[0].mxu0
        %649 = vdwg.mxu0
        %v650 = vsel %vm489, %v645, -inf
        %651 = vmax.xlane.f32.xlu0 %v650
        %v652 = vpop.xlane.xlu0 %651
        %v653 = vsub.f32 %v645, %v652
        %v654 = vmul.f32 %v653, 1.442695
        %v655 = vpow.pop %v654
        %v656 = vsel %vm489, %v655, 0.0
        %657 = vadd.xlane.f32.xlu0 %v656
        %v658 = vpop.xlane.xlu0 %657
        %v659 = vpack.c.bf16 %v655, %v655
        %s660 = scalar_lea.vmem %s358, 4 [#allocation8]
        %v661 = vld [vmem:[%s660] sm:$0xf]
        %v663 = vsel %vm489, %v659, 0
        %v666 = vsel %vm493, %v661, 0
        %668 = vmatprep.subr.bf16.mxu0 0
        %669 = vmatpush1.bf16.msra.mxu0 %v666
        %670 = vmatprep.subr.bf16.mxu0 0
        %671 = vmatpush1.bf16.msra.mxu0 0
        %672 = vmatprep.subr.bf16.mxu0 0
        %673 = vmatpush1.bf16.msra.mxu0 0
        %674 = vmatprep.subr.bf16.mxu0 0
        %675 = vmatpush1.bf16.msra.mxu0 0
        %676 = vmatprep.subr.bf16.mxu0 0
        %677 = vmatpush1.bf16.msra.mxu0 0
        %678 = vmatprep.subr.bf16.mxu0 0
        %679 = vmatpush1.bf16.msra.mxu0 0
        %680 = vmatprep.subr.bf16.mxu0 0
        %681 = vmatpush1.bf16.msra.mxu0 0
        %682 = vmatprep.subr.bf16.mxu0 0
        %683 = vmatpush1.bf16.msra.mxu0 0
        %684 = vmatprep.subr.bf16.mxu0 0
        %685 = vmatpush1.bf16.msra.mxu0 0
        %686 = vmatprep.subr.bf16.mxu0 0
        %687 = vmatpush1.bf16.msra.mxu0 0
        %688 = vmatprep.subr.bf16.mxu0 0
        %689 = vmatpush1.bf16.msra.mxu0 0
        %690 = vmatprep.subr.bf16.mxu0 0
        %691 = vmatpush1.bf16.msra.mxu0 0
        %692 = vmatprep.subr.bf16.mxu0 0
        %693 = vmatpush1.bf16.msra.mxu0 0
        %694 = vmatprep.subr.bf16.mxu0 0
        %695 = vmatpush1.bf16.msra.mxu0 0
        %696 = vmatprep.subr.bf16.mxu0 0
        %697 = vmatpush1.bf16.msra.mxu0 0
        %698 = vmatprep.subr.bf16.mxu0 0
        %699 = vmatpush1.bf16.msra.mxu0 0
        %700 = vmatprep.mubr.bf16.mxu0 0
        %701 = vmatmul.mubr.bf16.gmra.mrb[0].mxu0 %v663
        %v702 = vpop.f32.mrb[0].mxu0
        %v703 = vadd.f32 0.0, %v702
        %v704 = vpop.f32.mrb[0].mxu0
        %v705 = vpop.f32.mrb[0].mxu0
        %v706 = vpop.f32.mrb[0].mxu0
        %707 = vdwg.mxu0
        %v708 = vrcp.pop %v658
        %v709 = vmul.f32 %v703, %v708
        %v710 = vpack.c.bf16 %v709, %v709
        %v712 = vunpack.c.l.b16 %v710
        %v713 = vpack.c.b16 %v712, %v712
        %714 = vrot.lane.b32.xlu0 %v713, 8
        %v715 = vpop.permute.xlu0 %714
        %vm717 = vcmask 126016
        %718 = vst.msk [vmem:[#allocation2] sm:$0xf] %vm717, %v715
        %s719 = scalar_lea.vmem %s349, 8 [#allocation6]
        %v720 = vld [vmem:[%s719] sm:$0xf]
        %721 = vrot.lane.b32.xlu0 %v487, 112
        %v722 = vpop.permute.xlu0 %721
        %v724 = vsel %vm489, %v722, 0
        %v727 = vsel %vm493, %v720, 0
        %729 = vmatprep.subr.bf16.mxu0 0
        %730 = vmatpush1.bf16.msra.mxu0 %v727
        %731 = vmatprep.subr.bf16.mxu0 0
        %732 = vmatpush1.bf16.msra.mxu0 0
        %733 = vmatprep.subr.bf16.mxu0 0
        %734 = vmatpush1.bf16.msra.mxu0 0
        %735 = vmatprep.subr.bf16.mxu0 0
        %736 = vmatpush1.bf16.msra.mxu0 0
        %737 = vmatprep.subr.bf16.mxu0 0
        %738 = vmatpush1.bf16.msra.mxu0 0
        %739 = vmatprep.subr.bf16.mxu0 0
        %740 = vmatpush1.bf16.msra.mxu0 0
        %741 = vmatprep.subr.bf16.mxu0 0
        %742 = vmatpush1.bf16.msra.mxu0 0
        %743 = vmatprep.subr.bf16.mxu0 0
        %744 = vmatpush1.bf16.msra.mxu0 0
        %745 = vmatprep.subr.bf16.mxu0 0
        %746 = vmatpush1.bf16.msra.mxu0 0
        %747 = vmatprep.subr.bf16.mxu0 0
        %748 = vmatpush1.bf16.msra.mxu0 0
        %749 = vmatprep.subr.bf16.mxu0 0
        %750 = vmatpush1.bf16.msra.mxu0 0
        %751 = vmatprep.subr.bf16.mxu0 0
        %752 = vmatpush1.bf16.msra.mxu0 0
        %753 = vmatprep.subr.bf16.mxu0 0
        %754 = vmatpush1.bf16.msra.mxu0 0
        %755 = vmatprep.subr.bf16.mxu0 0
        %756 = vmatpush1.bf16.msra.mxu0 0
        %757 = vmatprep.subr.bf16.mxu0 0
        %758 = vmatpush1.bf16.msra.mxu0 0
        %759 = vmatprep.subr.bf16.mxu0 0
        %760 = vmatpush1.bf16.msra.mxu0 0
        %761 = vmatprep.mubr.bf16.mxu0 0
        %762 = vmatmul.mubr.bf16.gmra.mrb[0].mxu0 %v724
        %v763 = vpop.f32.mrb[0].mxu0
        %v764 = vadd.f32 0.0, %v763
        %v765 = vpop.f32.mrb[0].mxu0
        %v766 = vpop.f32.mrb[0].mxu0
        %v767 = vpop.f32.mrb[0].mxu0
        %768 = vdwg.mxu0
        %v769 = vsel %vm489, %v764, -inf
        %770 = vmax.xlane.f32.xlu0 %v769
        %v771 = vpop.xlane.xlu0 %770
        %v772 = vsub.f32 %v764, %v771
        %v773 = vmul.f32 %v772, 1.442695
        %v774 = vpow.pop %v773
        %v775 = vsel %vm489, %v774, 0.0
        %776 = vadd.xlane.f32.xlu0 %v775
        %v777 = vpop.xlane.xlu0 %776
        %v778 = vpack.c.bf16 %v774, %v774
        %s779 = scalar_lea.vmem %s358, 8 [#allocation8]
        %v780 = vld [vmem:[%s779] sm:$0xf]
        %v782 = vsel %vm489, %v778, 0
        %v785 = vsel %vm493, %v780, 0
        %787 = vmatprep.subr.bf16.mxu0 0
        %788 = vmatpush1.bf16.msra.mxu0 %v785
        %789 = vmatprep.subr.bf16.mxu0 0
        %790 = vmatpush1.bf16.msra.mxu0 0
        %791 = vmatprep.subr.bf16.mxu0 0
        %792 = vmatpush1.bf16.msra.mxu0 0
        %793 = vmatprep.subr.bf16.mxu0 0
        %794 = vmatpush1.bf16.msra.mxu0 0
        %795 = vmatprep.subr.bf16.mxu0 0
        %796 = vmatpush1.bf16.msra.mxu0 0
        %797 = vmatprep.subr.bf16.mxu0 0
        %798 = vmatpush1.bf16.msra.mxu0 0
        %799 = vmatprep.subr.bf16.mxu0 0
        %800 = vmatpush1.bf16.msra.mxu0 0
        %801 = vmatprep.subr.bf16.mxu0 0
        %802 = vmatpush1.bf16.msra.mxu0 0
        %803 = vmatprep.subr.bf16.mxu0 0
        %804 = vmatpush1.bf16.msra.mxu0 0
        %805 = vmatprep.subr.bf16.mxu0 0
        %806 = vmatpush1.bf16.msra.mxu0 0
        %807 = vmatprep.subr.bf16.mxu0 0
        %808 = vmatpush1.bf16.msra.mxu0 0
        %809 = vmatprep.subr.bf16.mxu0 0
        %810 = vmatpush1.bf16.msra.mxu0 0
        %811 = vmatprep.subr.bf16.mxu0 0
        %812 = vmatpush1.bf16.msra.mxu0 0
        %813 = vmatprep.subr.bf16.mxu0 0
        %814 = vmatpush1.bf16.msra.mxu0 0
        %815 = vmatprep.subr.bf16.mxu0 0
        %816 = vmatpush1.bf16.msra.mxu0 0
        %817 = vmatprep.subr.bf16.mxu0 0
        %818 = vmatpush1.bf16.msra.mxu0 0
        %819 = vmatprep.mubr.bf16.mxu0 0
        %820 = vmatmul.mubr.bf16.gmra.mrb[0].mxu0 %v782
        %v821 = vpop.f32.mrb[0].mxu0
        %v822 = vadd.f32 0.0, %v821
        %v823 = vpop.f32.mrb[0].mxu0
        %v824 = vpop.f32.mrb[0].mxu0
        %v825 = vpop.f32.mrb[0].mxu0
        %826 = vdwg.mxu0
        %v827 = vrcp.pop %v777
        %v828 = vmul.f32 %v822, %v827
        %v829 = vpack.c.bf16 %v828, %v828
        %v831 = vunpack.c.l.b16 %v829
        %v832 = vpack.c.b16 %v831, %v831
        %833 = vrot.lane.b32.xlu0 %v832, 16
        %v834 = vpop.permute.xlu0 %833
        %vm836 = vcmask 191616
        %837 = vst.msk [vmem:[#allocation2] sm:$0xf] %vm836, %v834
        %s838 = scalar_lea.vmem %s349, 12 [#allocation6]
        %v839 = vld [vmem:[%s838] sm:$0xf]
        %840 = vrot.lane.b32.xlu0 %v487, 104
        %v841 = vpop.permute.xlu0 %840
        %v843 = vsel %vm489, %v841, 0
        %v846 = vsel %vm493, %v839, 0
        %848 = vmatprep.subr.bf16.mxu0 0
        %849 = vmatpush1.bf16.msra.mxu0 %v846
        %850 = vmatprep.subr.bf16.mxu0 0
        %851 = vmatpush1.bf16.msra.mxu0 0
        %852 = vmatprep.subr.bf16.mxu0 0
        %853 = vmatpush1.bf16.msra.mxu0 0
        %854 = vmatprep.subr.bf16.mxu0 0
        %855 = vmatpush1.bf16.msra.mxu0 0
        %856 = vmatprep.subr.bf16.mxu0 0
        %857 = vmatpush1.bf16.msra.mxu0 0
        %858 = vmatprep.subr.bf16.mxu0 0
        %859 = vmatpush1.bf16.msra.mxu0 0
        %860 = vmatprep.subr.bf16.mxu0 0
        %861 = vmatpush1.bf16.msra.mxu0 0
        %862 = vmatprep.subr.bf16.mxu0 0
        %863 = vmatpush1.bf16.msra.mxu0 0
        %864 = vmatprep.subr.bf16.mxu0 0
        %865 = vmatpush1.bf16.msra.mxu0 0
        %866 = vmatprep.subr.bf16.mxu0 0
        %867 = vmatpush1.bf16.msra.mxu0 0
        %868 = vmatprep.subr.bf16.mxu0 0
        %869 = vmatpush1.bf16.msra.mxu0 0
        %870 = vmatprep.subr.bf16.mxu0 0
        %871 = vmatpush1.bf16.msra.mxu0 0
        %872 = vmatprep.subr.bf16.mxu0 0
        %873 = vmatpush1.bf16.msra.mxu0 0
        %874 = vmatprep.subr.bf16.mxu0 0
        %875 = vmatpush1.bf16.msra.mxu0 0
        %876 = vmatprep.subr.bf16.mxu0 0
        %877 = vmatpush1.bf16.msra.mxu0 0
        %878 = vmatprep.subr.bf16.mxu0 0
        %879 = vmatpush1.bf16.msra.mxu0 0
        %880 = vmatprep.mubr.bf16.mxu0 0
        %881 = vmatmul.mubr.bf16.gmra.mrb[0].mxu0 %v843
        %v882 = vpop.f32.mrb[0].mxu0
        %v883 = vadd.f32 0.0, %v882
        %v884 = vpop.f32.mrb[0].mxu0
        %v885 = vpop.f32.mrb[0].mxu0
        %v886 = vpop.f32.mrb[0].mxu0
        %887 = vdwg.mxu0
        %v888 = vsel %vm489, %v883, -inf
        %889 = vmax.xlane.f32.xlu0 %v888
        %v890 = vpop.xlane.xlu0 %889
        %v891 = vsub.f32 %v883, %v890
        %v892 = vmul.f32 %v891, 1.442695
        %v893 = vpow.pop %v892
        %v894 = vsel %vm489, %v893, 0.0
        %895 = vadd.xlane.f32.xlu0 %v894
        %v896 = vpop.xlane.xlu0 %895
        %v897 = vpack.c.bf16 %v893, %v893
        %s898 = scalar_lea.vmem %s358, 12 [#allocation8]
        %v899 = vld [vmem:[%s898] sm:$0xf]
        %v901 = vsel %vm489, %v897, 0
        %v904 = vsel %vm493, %v899, 0
        %906 = vmatprep.subr.bf16.mxu0 0
        %907 = vmatpush1.bf16.msra.mxu0 %v904
        %908 = vmatprep.subr.bf16.mxu0 0
        %909 = vmatpush1.bf16.msra.mxu0 0
        %910 = vmatprep.subr.bf16.mxu0 0
        %911 = vmatpush1.bf16.msra.mxu0 0
        %912 = vmatprep.subr.bf16.mxu0 0
        %913 = vmatpush1.bf16.msra.mxu0 0
        %914 = vmatprep.subr.bf16.mxu0 0
        %915 = vmatpush1.bf16.msra.mxu0 0
        %916 = vmatprep.subr.bf16.mxu0 0
        %917 = vmatpush1.bf16.msra.mxu0 0
        %918 = vmatprep.subr.bf16.mxu0 0
        %919 = vmatpush1.bf16.msra.mxu0 0
        %920 = vmatprep.subr.bf16.mxu0 0
        %921 = vmatpush1.bf16.msra.mxu0 0
        %922 = vmatprep.subr.bf16.mxu0 0
        %923 = vmatpush1.bf16.msra.mxu0 0
        %924 = vmatprep.subr.bf16.mxu0 0
        %925 = vmatpush1.bf16.msra.mxu0 0
        %926 = vmatprep.subr.bf16.mxu0 0
        %927 = vmatpush1.bf16.msra.mxu0 0
        %928 = vmatprep.subr.bf16.mxu0 0
        %929 = vmatpush1.bf16.msra.mxu0 0
        %930 = vmatprep.subr.bf16.mxu0 0
        %931 = vmatpush1.bf16.msra.mxu0 0
        %932 = vmatprep.subr.bf16.mxu0 0
        %933 = vmatpush1.bf16.msra.mxu0 0
        %934 = vmatprep.subr.bf16.mxu0 0
        %935 = vmatpush1.bf16.msra.mxu0 0
        %936 = vmatprep.subr.bf16.mxu0 0
        %937 = vmatpush1.bf16.msra.mxu0 0
        %938 = vmatprep.mubr.bf16.mxu0 0
        %939 = vmatmul.mubr.bf16.gmra.mrb[0].mxu0 %v901
        %v940 = vpop.f32.mrb[0].mxu0
        %v941 = vadd.f32 0.0, %v940
        %v942 = vpop.f32.mrb[0].mxu0
        %v943 = vpop.f32.mrb[0].mxu0
        %v944 = vpop.f32.mrb[0].mxu0
        %945 = vdwg.mxu0
        %v946 = vrcp.pop %v896
        %v947 = vmul.f32 %v941, %v946
        %v948 = vpack.c.bf16 %v947, %v947
        %v950 = vunpack.c.l.b16 %v948
        %v951 = vpack.c.b16 %v950, %v950
        %952 = vrot.lane.b32.xlu0 %v951, 24
        %v953 = vpop.permute.xlu0 %952
        %vm955 = vcmask 257216
        %956 = vst.msk [vmem:[#allocation2] sm:$0xf] %vm955, %v953
        %v957 = vld [vmem:[#allocation2] sm:$0xf]
        %v958 = vld [vmem:[%s5] sm:$0xf]
        %v959 = vld [vmem:[%s5 + $0x4] sm:$0xf]
        %v960 = vld [vmem:[%s5 + $0x8] sm:$0xf]
        %v961 = vld [vmem:[%s5 + $0xc] sm:$0xf]
        %v962 = vld [vmem:[%s6] sm:$0x1]
        %v964 = vlaneseq
        %v965 = vshrl.u32 %v964, 7
        %v966 = vsub.s32 0, %v965
        %v967 = vrot.slane %v962, %v966
        %v973 = vunpack.c.l.b16 %v958
        %v974 = vunpack.c.l.b16 %v959
        %v975 = vunpack.c.l.b16 %v960
        %v976 = vunpack.c.l.b16 %v961
        %v977 = vpack.c.b16 %v974, %v973
        %v978 = vpack.c.b16 %v976, %v975
        %v982 = vsel %vm428, %v957, 0
        %984 = vmatprep.subr.bf16.mxu0 0
        %985 = vmatpush1.bf16.msra.mxu0 %v977
        %986 = vmatprep.subr.bf16.mxu0 0
        %987 = vmatpush1.bf16.msra.mxu0 %v978
        %988 = vmatprep.subr.bf16.mxu0 0
        %989 = vmatpush1.bf16.msra.mxu0 0
        %990 = vmatprep.subr.bf16.mxu0 0
        %991 = vmatpush1.bf16.msra.mxu0 0
        %992 = vmatprep.subr.bf16.mxu0 0
        %993 = vmatpush1.bf16.msra.mxu0 0
        %994 = vmatprep.subr.bf16.mxu0 0
        %995 = vmatpush1.bf16.msra.mxu0 0
        %996 = vmatprep.subr.bf16.mxu0 0
        %997 = vmatpush1.bf16.msra.mxu0 0
        %998 = vmatprep.subr.bf16.mxu0 0
        %999 = vmatpush1.bf16.msra.mxu0 0
        %1000 = vmatprep.subr.bf16.mxu0 0
        %1001 = vmatpush1.bf16.msra.mxu0 0
        %1002 = vmatprep.subr.bf16.mxu0 0
        %1003 = vmatpush1.bf16.msra.mxu0 0
        %1004 = vmatprep.subr.bf16.mxu0 0
        %1005 = vmatpush1.bf16.msra.mxu0 0
        %1006 = vmatprep.subr.bf16.mxu0 0
        %1007 = vmatpush1.bf16.msra.mxu0 0
        %1008 = vmatprep.subr.bf16.mxu0 0
        %1009 = vmatpush1.bf16.msra.mxu0 0
        %1010 = vmatprep.subr.bf16.mxu0 0
        %1011 = vmatpush1.bf16.msra.mxu0 0
        %1012 = vmatprep.subr.bf16.mxu0 0
        %1013 = vmatpush1.bf16.msra.mxu0 0
        %1014 = vmatprep.subr.bf16.mxu0 0
        %1015 = vmatpush1.bf16.msra.mxu0 0
        %1016 = vmatprep.mubr.bf16.mxu0 0
        %1017 = vmatmul.mubr.bf16.gmra.mrb[0].mxu0 %v982
        %v1018 = vpop.f32.mrb[0].mxu0
        %v1019 = vadd.f32 %v967, %v1018
        %v1020 = vpop.f32.mrb[0].mxu0
        %v1021 = vpop.f32.mrb[0].mxu0
        %v1022 = vpop.f32.mrb[0].mxu0
        %1023 = vdwg.mxu0
        %1024 = vst.msk [vmem:[%s402] sm:$0xff] %vm428, %v1019
        %s1025 = sand.u32 %s214, 1
        %s1026 = scalar_lea.sflag [#allocation5], %s1025
        %s1027 = sand.u32 %s214, 1
        %s1028 = smul.addr %s1027, 8
        %s1029 = scalar_lea.vmem [#allocation11], %s1028
        // Predicated region
        $region65: #{tpu_custom_call.1} parent=47 // pred_check
          %p1030 = pneg %p224
        $region66: #{tpu_custom_call.1} parent=47 // pred_check_branch
          %1032 = sbr.rel (%p1030) target = $region68
        $region67: #{tpu_custom_call.1} parent=47 // pred_region
          %s1034 = ssub.s32 128, 128
          %1035 = vsyncadd %s1026, %s1034
          %s1036 = sadd.s32 %s33, %s32
          %s1037 = smul.addr %s1036, 128
          %s1038 = scalar_lea.hbm %s7, %s1037
          %s1040 = sshll.u32 %s1029, 4
          %s1041 = int_to_ptr.vmem [resolvable:$true] %s1040
          %1043 = dma.vmem_to_hbm [thread:$0]  %s1041, 128, %s1038, %s1026
        $region68: #{tpu_custom_call.1} parent=47 // pred_fallthru
          _
      $region48: #{tpu_custom_call.1} parent=5 // pred_fallthru
        _
      %p1044 = scmp.le.s32.totalorder 2, %s23
      // Predicated region
      $region69: #{tpu_custom_call.1} parent=5 // pred_check
        %p1045 = pneg %p1044
      $region70: #{tpu_custom_call.1} parent=5 // pred_check_branch
        %1047 = sbr.rel (%p1045) target = $region72
      $region71: #{tpu_custom_call.1} parent=5 // pred_region
        %s1048 = ssub.s32 %s23, 2
        // Predicated region
        $region73: #{tpu_custom_call.1} parent=71 // pred_check
          %p1049 = pneg %p230
        $region74: #{tpu_custom_call.1} parent=71 // pred_check_branch
          %1051 = sbr.rel (%p1049) target = $region76
        $region75: #{tpu_custom_call.1} parent=71 // pred_region
          %s1052 = sand.u32 %s215, 1
          %s1053 = scalar_lea.sflag [#allocation5], %s1052
          %s1054 = sand.u32 %s215, 1
          %s1055 = smul.addr %s1054, 8
          %s1056 = scalar_lea.vmem [#allocation11], %s1055
          %1057 = dma.done %s1053, 128
        $region76: #{tpu_custom_call.1} parent=71 // pred_fallthru
          _
      $region72: #{tpu_custom_call.1} parent=5 // pred_fallthru
        _
    $region6: #{tpu_custom_call.1} parent=1 // loop_footer
      %s27 = sadd.s32 1, %s23
    $region7: #{tpu_custom_call.1} parent=1 // loop_footer_branch
      %22 = sbr.rel target = $region3
    $region8: #{tpu_custom_call.1} parent=1 // loop_exit
      _
    %1058 = vsyncpa [#allocation4], 1
    %s1059 = scalar_lea.sflag [#allocation4], 1
    %1060 = vsyncpa %s1059, 1
    %1061 = vsyncpa [#allocation7], 1
    %s1062 = scalar_lea.sflag [#allocation7], 1
    %1063 = vsyncpa %s1062, 1
    %1064 = vsyncpa [#allocation10], 1
    %1065 = vsyncpa [#allocation5], 1
    %s1066 = scalar_lea.sflag [#allocation5], 1
    %1067 = vsyncpa %s1066, 1

</llo_original>
